<compile_context>
chip_gen: v6e
topology: v6e:2x2x1
jax: 0.10.0
libtpu: 0.0.40
codegen_flags: <defaults>
</compile_context>

<pallas_src>
import functools

import jax
import jax.numpy as jnp
from jax.experimental import pallas as pl
from jax.experimental.pallas import tpu as pltpu


def _gemm_bias_relu_kernel(x_ref, w_ref, b_ref, o_ref):
    # x_ref : (K, TILE_M)          bf16  transposed im2col patches (M on lanes)
    # w_ref : (C_OUT_PAD, K)       bf16  reshaped conv weights (resident)
    # b_ref : (C_OUT_PAD, 1)       f32   bias (lane-broadcast)
    # o_ref : (C_OUT_PAD, TILE_M)  bf16  lane-dense output slab (no 128-pad)
    acc = jnp.dot(w_ref[...], x_ref[...], preferred_element_type=jnp.float32)
    o_ref[...] = jnp.maximum(acc + b_ref[...], 0.0).astype(o_ref.dtype)


def _choose_tile_m(M):
    # Multiple of 128 (lane-dense x / out blocks); as large as possible to
    # amortize the ~0.35us per-grid-step overhead, but keep >= 4 grid steps
    # (>= 2 pipelined steps per v7x TensorCore) whenever M allows it.
    for tile in (2048, 1024, 512, 256):
        if M >= 4 * tile:
            return tile
    return 128


def cnn2d_cell_forward(x_nchw, weight_oihw, bias, *, stride=1, padding=1,
                       compute_dtype=jnp.bfloat16):
    """Equivalent of CNN2D_cell.forward (batch_norm=False): Conv2d + bias + ReLU."""
    N, C_in, H, W = x_nchw.shape
    C_out, _, KH, KW = weight_oihw.shape
    OH = (H + 2 * padding - KH) // stride + 1
    OW = (W + 2 * padding - KW) // stride + 1
    M = N * OH * OW
    K = KH * KW * C_in

    # ---- glue (XLA): transposed im2col -> x^T of shape (K, M) --------------
    # Put channels first once, so every static tap slice is already
    # (C_in, N, OH, OW) and reshapes to a (C_in, M) slab with M as fast axis.
    x_c = jnp.transpose(x_nchw, (1, 0, 2, 3))                    # (C_in,N,H,W)
    x_c = jnp.pad(x_c, ((0, 0), (0, 0),
                        (padding, padding), (padding, padding)))
    taps = []
    for ki in range(KH):                                         # static taps
        for kj in range(KW):
            t = x_c[:, :, ki: ki + (OH - 1) * stride + 1: stride,
                          kj: kj + (OW - 1) * stride + 1: stride]
            taps.append(t.reshape(C_in, M))
    x_t = jnp.concatenate(taps, axis=0).astype(compute_dtype)    # (K, M)

    # weights OIHW -> (C_out, KH, KW, C_in) -> (C_out, K); pad C_out only to a
    # sublane multiple of 16 (bf16 packing), not to 128 lanes.
    c_out_pad = max(16, -(-C_out // 16) * 16)
    w_t = jnp.transpose(weight_oihw, (0, 2, 3, 1)).reshape(C_out, K)
    w_t = jnp.pad(w_t, ((0, c_out_pad - C_out), (0, 0))).astype(compute_dtype)
    b_t = jnp.pad(bias.astype(jnp.float32),
                  (0, c_out_pad - C_out)).reshape(c_out_pad, 1)

    # ---- M tiling -----------------------------------------------------------
    tile_m = _choose_tile_m(M)
    n_blocks = -(-M // tile_m)
    if n_blocks > 1 and n_blocks % 2:     # even -> both v7x TCs get equal work
        n_blocks += 1
    m_pad = n_blocks * tile_m
    if m_pad != M:
        x_t = jnp.pad(x_t, ((0, 0), (0, m_pad - M)))
    # NOTE: padded M columns produce ReLU(bias) junk in out_t; they are sliced
    # off below — do not remove the [:, :M] slice.

    cost = pl.CostEstimate(
        flops=2 * m_pad * K * c_out_pad,
        transcendentals=0,
        bytes_accessed=(K * m_pad * 2            # x^T read (bf16)
                        + c_out_pad * K * 2      # weights (bf16)
                        + c_out_pad * 4          # bias (f32)
                        + c_out_pad * m_pad * 2  # output write (bf16)
                        ),
    )

    out_t = pl.pallas_call(
        _gemm_bias_relu_kernel,
        out_shape=jax.ShapeDtypeStruct((c_out_pad, m_pad), compute_dtype),
        grid_spec=pltpu.PrefetchScalarGridSpec(
            num_scalar_prefetch=0,
            grid=(n_blocks,),
            in_specs=[
                pl.BlockSpec((K, tile_m), lambda m: (0, m)),
                pl.BlockSpec((c_out_pad, K), lambda m: (0, 0)),
                pl.BlockSpec((c_out_pad, 1), lambda m: (0, 0)),
            ],
            out_specs=pl.BlockSpec((c_out_pad, tile_m), lambda m: (0, m)),
        ),
        compiler_params=pltpu.CompilerParams(
            dimension_semantics=("parallel",)),
        cost_estimate=cost,
    )(x_t, w_t, b_t)

    # ---- back to PyTorch NCHW convention ------------------------------------
    out = out_t[:C_out, :M].reshape(C_out, N, OH, OW)
    return jnp.transpose(out, (1, 0, 2, 3)).astype(x_nchw.dtype)


def _orthogonal_init(key, c_out, c_in, kh, kw):
    """Mimic torch.nn.init.orthogonal_ on a (c_out, c_in, kh, kw) weight."""
    cols = c_in * kh * kw
    a = jax.random.normal(key, (cols, c_out), dtype=jnp.float32)
    q, r = jnp.linalg.qr(a)
    q = q * jnp.sign(jnp.diag(r))
    return q.T.reshape(c_out, c_in, kh, kw)


if __name__ == "__main__":
    # CNN2D_cell defaults: stride=1, padding=1.
    channel_input, channel_hidden, kernel_size = 4, 32, 3
    stride, padding = 1, 1
    N, H, W = 2, 16, 16

    key = jax.random.PRNGKey(0)
    kx, kw_key = jax.random.split(key)

    x = jax.random.normal(kx, (N, channel_input, H, W), dtype=jnp.float32)
    weight = _orthogonal_init(kw_key, channel_hidden, channel_input,
                              kernel_size, kernel_size)
    bias = jnp.zeros((channel_hidden,), dtype=jnp.float32)   # constant_(0.0)

    fwd = jax.jit(functools.partial(cnn2d_cell_forward,
                                    stride=stride, padding=padding))
    out = jax.block_until_ready(fwd(x, weight, bias))

    # reference 1: same bf16 operand rounding + f32 accumulation
    ref_bf16 = jax.lax.conv_general_dilated(
        x.astype(jnp.bfloat16), weight.astype(jnp.bfloat16),
        window_strides=(stride, stride),
        padding=[(padding, padding), (padding, padding)],
        dimension_numbers=("NCHW", "OIHW", "NCHW"),
        preferred_element_type=jnp.float32)
    ref_bf16 = jnp.maximum(ref_bf16 + bias[None, :, None, None], 0.0)

    # reference 2: full-f32 nn.Conv2d + ReLU semantics
    ref_f32 = jax.lax.conv_general_dilated(
        x, weight, window_strides=(stride, stride),
        padding=[(padding, padding), (padding, padding)],
        dimension_numbers=("NCHW", "OIHW", "NCHW"))
    ref_f32 = jnp.maximum(ref_f32 + bias[None, :, None, None], 0.0)

    assert out.shape == ref_f32.shape, (out.shape, ref_f32.shape)
    # kernel stores bf16 activations -> tolerances absorb bf16 rounding
    assert jnp.allclose(out, ref_bf16, atol=2e-2, rtol=2e-2), \
        "mismatch vs bf16-operand reference"
    assert jnp.allclose(out, ref_f32, atol=6e-2, rtol=6e-2), \
        "mismatch vs f32 reference"

    print("KERNEL_OK")
</pallas_src>

<mosaic_0001>
module attributes {stable_mosaic.version = 11 : i64} {
  func.func @_gemm_bias_relu_kernel(%arg0: i32, %arg1: memref<36x128xbf16, #tpu.memory_space<vmem>>, %arg2: memref<32x36xbf16, #tpu.memory_space<vmem>>, %arg3: memref<32x1xf32, #tpu.memory_space<vmem>>, %arg4: memref<32x128xbf16, #tpu.memory_space<vmem>>) attributes {dimension_semantics = [#tpu.dimension_semantics<parallel>], iteration_bounds = array<i64: 4>, scalar_prefetch = 0 : i64, scratch_operands = 0 : i64, tpu.core_type = #tpu.core_type<tc>, window_params = [{transform_indices = @transform_0, window_bounds = array<i64: 36, 128>}, {pipeline_mode = #tpu.pipeline_mode<synchronous>, transform_indices = @transform_1, window_bounds = array<i64: 32, 36>}, {pipeline_mode = #tpu.pipeline_mode<synchronous>, transform_indices = @transform_2, window_bounds = array<i64: 32, 1>}, {transform_indices = @transform_3, window_bounds = array<i64: 32, 128>}]} {
    %c0 = arith.constant 0 : index
    %c0_0 = arith.constant 0 : index
    %0 = vector.load %arg2[%c0, %c0_0] : memref<32x36xbf16, #tpu.memory_space<vmem>>, vector<32x36xbf16>
    %c0_1 = arith.constant 0 : index
    %c0_2 = arith.constant 0 : index
    %1 = vector.load %arg1[%c0_1, %c0_2] : memref<36x128xbf16, #tpu.memory_space<vmem>>, vector<36x128xbf16>
    %cst = arith.constant dense<0.000000e+00> : vector<32x128xf32>
    %2 = tpu.matmul %0, %1, %cst {dimension_numbers = #tpu.dot_dimension_numbers<[1], [0], [0], [1], [0, 0, 1, 1], [], []>} : vector<32x36xbf16>, vector<36x128xbf16>, vector<32x128xf32> -> vector<32x128xf32>
    %c0_3 = arith.constant 0 : index
    %c0_4 = arith.constant 0 : index
    %3 = vector.load %arg3[%c0_3, %c0_4] : memref<32x1xf32, #tpu.memory_space<vmem>>, vector<32x1xf32>
    %4 = vector.broadcast %3 : vector<32x1xf32> to vector<32x128xf32>
    %5 = arith.addf %2, %4 : vector<32x128xf32>
    %cst_5 = arith.constant 0.000000e+00 : f32
    %6 = vector.broadcast %cst_5 : f32 to vector<32x128xf32>
    %7 = arith.maximumf %5, %6 : vector<32x128xf32>
    %8 = arith.truncf %7 : vector<32x128xf32> to vector<32x128xbf16>
    %c0_6 = arith.constant 0 : index
    %c0_7 = arith.constant 0 : index
    %9 = vector.load %arg4[%c0_6, %c0_7] : memref<32x128xbf16, #tpu.memory_space<vmem>>, vector<32x128xbf16>
    tpu.vector_store %arg4[%c0_6, %c0_7], %8 {strides = array<i32>} : memref<32x128xbf16, #tpu.memory_space<vmem>>, vector<32x128xbf16>,
    return
  }
  func.func @transform_0(%arg0: i32) -> (i32, i32) {
    %c0_i32 = arith.constant 0 : i32
    %c0_i32_0 = arith.constant 0 : i32
    return %c0_i32, %arg0 : i32, i32
  }
  func.func @transform_1(%arg0: i32) -> (i32, i32) {
    %c0_i32 = arith.constant 0 : i32
    %c0_i32_0 = arith.constant 0 : i32
    %c0_i32_1 = arith.constant 0 : i32
    return %c0_i32, %c0_i32_0 : i32, i32
  }
  func.func @transform_2(%arg0: i32) -> (i32, i32) {
    %c0_i32 = arith.constant 0 : i32
    %c0_i32_0 = arith.constant 0 : i32
    %c0_i32_1 = arith.constant 0 : i32
    return %c0_i32, %c0_i32_0 : i32, i32
  }
  func.func @transform_3(%arg0: i32) -> (i32, i32) {
    %c0_i32 = arith.constant 0 : i32
    %c0_i32_0 = arith.constant 0 : i32
    return %c0_i32, %arg0 : i32, i32
  }
}

</mosaic_0001>

<llo_original>
// kernel: cnn2d_cell_forward.1
$region0: #{cnn2d_cell_forward.1}
  #allocation0 [shape = 'u32[]', space=smem, size = 0x4, offset = 0x4, fixed_abs, tag = 'smem constant byte address 0x4 - core index']
  #allocation1 [shape = 'u32[144,128]{1,0:T(1,128)}', space=vmem, size = 0x12000, scoped, tag = 'internal scratch']
  %s0 = inlined_call_operand.vmem [shape: bf16[36,512], index: 0, kind: input, shape index: {}]
  %s1 = inlined_call_operand.vmem [shape: bf16[32,36], index: 1, kind: input, shape index: {}]
  %s2 = inlined_call_operand.vmem [shape: f32[32,1], index: 2, kind: input, shape index: {}]
  %s3 = inlined_call_operand.vmem [shape: bf16[32,512], index: 3, kind: output, shape index: {}]
  %s4 = sld [smem:[#allocation0]]
  $region123: #{cnn2d_cell_forward.1} parent=0
    _
  %s6 = ssub.s32 1, %s4
  %s7 = scalar_select 0, %s6, %s4
  $region1: #{cnn2d_cell_forward.1} parent=0
    #allocation2 [shape = 'u8[20480]{0}', space=vmem, size = 0x5000, scoped, tag = 'input window, operand 0']
    #allocation3 [shape = 'u8[16384]{0}', space=vmem, size = 0x4000, scoped, tag = 'output window, operand 0']
    loop: start=0, step=1, limit=6
    $region2: #{cnn2d_cell_forward.1} parent=1 // loop_pre_header
      _
    $region3: #{cnn2d_cell_forward.1} parent=1 // loop_header
      %s9 = sphi 0, %s13
      %p10 = scmp.ge.s32.totalorder %s9, 6
      %s19 = sphi 0, %s21
      %s22 = sphi 0, %s19
      %s23 = sphi 0, %s22
      %s39 = sphi 0, %s23
      %s43 = sphi 0, %s43
      %s45 = sphi 0, %s43
      %s46 = sphi 0, %s45
      %s60 = sphi 0, %s46
      %s64 = sphi 0, %s64
      %s66 = sphi 0, %s64
      %s67 = sphi 0, %s66
      %s81 = sphi 0, %s67
      %s87 = sphi 0, %s89
      %s90 = sphi 0, %s87
      %s91 = sphi 0, %s90
      %s107 = sphi 0, %s91
    $region4: #{cnn2d_cell_forward.1} parent=1 // loop_header_branch
      %12 = sbr.rel (%p10) target = $region8
    $region5: #{cnn2d_cell_forward.1} parent=1 // loop_body
      %s14 = ssub.s32 %s9, 1
      %s15 = ssub.s32 %s9, 2
      %s16 = sadd.s32 %s9, 1
      %s17 = ssub.s32 %s9, %s16
      %p18 = scmp.eq.s32.totalorder %s17, 0
      %s20 = sadd.s32 %s19, 1
      %s21 = scalar_select %p18, %s19, %s20
      %p24 = pneg %p18
      %p25 = scmp.eq.s32.totalorder %s9, 3
      %p26 = por %p24, %p25
      %p27 = scmp.ne.s32.totalorder %s19, %s22
      %p28 = scmp.eq.s32.totalorder %s9, 0
      %p29 = por %p27, %p28
      %p30 = scmp.ne.s32.totalorder %s19, %s22
      %p31 = scmp.eq.s32.totalorder %s14, 3
      %p32 = por %p30, %p31
      %p33 = scmp.ne.s32.totalorder %s22, %s23
      %p34 = scmp.eq.s32.totalorder %s14, 0
      %p35 = por %p33, %p34
      %p36 = scmp.ne.s32.totalorder %s22, %s23
      %p37 = scmp.eq.s32.totalorder %s15, 3
      %p38 = por %p36, %p37
      %p40 = scmp.ne.s32.totalorder %s23, %s39
      %p41 = scmp.eq.s32.totalorder %s15, 0
      %p42 = por %p40, %p41
      %s44 = sadd.s32 %s43, 1
      %p47 = scmp.eq.s32.totalorder %s9, 3
      %p48 = scmp.ne.s32.totalorder %s43, %s45
      %p49 = scmp.eq.s32.totalorder %s9, 0
      %p50 = por %p48, %p49
      %p51 = scmp.ne.s32.totalorder %s43, %s45
      %p52 = scmp.eq.s32.totalorder %s14, 3
      %p53 = por %p51, %p52
      %p54 = scmp.ne.s32.totalorder %s45, %s46
      %p55 = scmp.eq.s32.totalorder %s14, 0
      %p56 = por %p54, %p55
      %p57 = scmp.ne.s32.totalorder %s45, %s46
      %p58 = scmp.eq.s32.totalorder %s15, 3
      %p59 = por %p57, %p58
      %p61 = scmp.ne.s32.totalorder %s46, %s60
      %p62 = scmp.eq.s32.totalorder %s15, 0
      %p63 = por %p61, %p62
      %s65 = sadd.s32 %s64, 1
      %p68 = scmp.eq.s32.totalorder %s9, 3
      %p69 = scmp.ne.s32.totalorder %s64, %s66
      %p70 = scmp.eq.s32.totalorder %s9, 0
      %p71 = por %p69, %p70
      %p72 = scmp.ne.s32.totalorder %s64, %s66
      %p73 = scmp.eq.s32.totalorder %s14, 3
      %p74 = por %p72, %p73
      %p75 = scmp.ne.s32.totalorder %s66, %s67
      %p76 = scmp.eq.s32.totalorder %s14, 0
      %p77 = por %p75, %p76
      %p78 = scmp.ne.s32.totalorder %s66, %s67
      %p79 = scmp.eq.s32.totalorder %s15, 3
      %p80 = por %p78, %p79
      %p82 = scmp.ne.s32.totalorder %s67, %s81
      %p83 = scmp.eq.s32.totalorder %s15, 0
      %p84 = por %p82, %p83
      %s85 = ssub.s32 %s9, %s16
      %p86 = scmp.eq.s32.totalorder %s85, 0
      %s88 = sadd.s32 %s87, 1
      %s89 = scalar_select %p86, %s87, %s88
      %p92 = pneg %p86
      %p93 = scmp.eq.s32.totalorder %s9, 3
      %p94 = por %p92, %p93
      %p95 = scmp.ne.s32.totalorder %s87, %s90
      %p96 = scmp.eq.s32.totalorder %s9, 0
      %p97 = por %p95, %p96
      %p98 = scmp.ne.s32.totalorder %s87, %s90
      %p99 = scmp.eq.s32.totalorder %s14, 3
      %p100 = por %p98, %p99
      %p101 = scmp.ne.s32.totalorder %s90, %s91
      %p102 = scmp.eq.s32.totalorder %s14, 0
      %p103 = por %p101, %p102
      %p104 = scmp.ne.s32.totalorder %s90, %s91
      %p105 = scmp.eq.s32.totalorder %s15, 3
      %p106 = por %p104, %p105
      %p108 = scmp.ne.s32.totalorder %s91, %s107
      %p109 = scmp.eq.s32.totalorder %s15, 0
      %p110 = por %p108, %p109
      %p111 = scmp.le.s32.totalorder 1, %s9
      %p112 = scmp.lt.s32.totalorder %s9, 5
      %p113 = pnand %p111, %p112
      %p114 = pneg %p113
      // Predicated region
      $region9: #{cnn2d_cell_forward.1} parent=5 // pred_check
        _
      $region10: #{cnn2d_cell_forward.1} parent=5 // pred_check_branch
        %116 = sbr.rel (%p113) target = $region12
      $region11: #{cnn2d_cell_forward.1} parent=5 // pred_region
        %s117 = ssub.s32 %s9, 1
        // Predicated region
        $region13: #{cnn2d_cell_forward.1} parent=11 // pred_check
          %p118 = pneg %p56
        $region14: #{cnn2d_cell_forward.1} parent=11 // pred_check_branch
          %120 = sbr.rel (%p118) target = $region16
        $region15: #{cnn2d_cell_forward.1} parent=11 // pred_region
          _
        $region16: #{cnn2d_cell_forward.1} parent=11 // pred_fallthru
          _
        // Predicated region
        $region17: #{cnn2d_cell_forward.1} parent=11 // pred_check
          %p121 = pneg %p77
        $region18: #{cnn2d_cell_forward.1} parent=11 // pred_check_branch
          %123 = sbr.rel (%p121) target = $region20
        $region19: #{cnn2d_cell_forward.1} parent=11 // pred_region
          _
        $region20: #{cnn2d_cell_forward.1} parent=11 // pred_fallthru
          _
      $region12: #{cnn2d_cell_forward.1} parent=5 // pred_fallthru
        _
      %p124 = scmp.lt.s32.totalorder %s9, 4
      // Predicated region
      $region21: #{cnn2d_cell_forward.1} parent=5 // pred_check
        %p125 = pneg %p124
      $region22: #{cnn2d_cell_forward.1} parent=5 // pred_check_branch
        %127 = sbr.rel (%p125) target = $region24
      $region23: #{cnn2d_cell_forward.1} parent=5 // pred_region
        // Predicated region
        $region25: #{cnn2d_cell_forward.1} parent=23 // pred_check
          %p128 = pneg %p29
        $region26: #{cnn2d_cell_forward.1} parent=23 // pred_check_branch
          %130 = sbr.rel (%p128) target = $region28
        $region27: #{cnn2d_cell_forward.1} parent=23 // pred_region
          %s131 = sand.u32 %s19, 1
          %s132 = sand.u32 %s19, 1
          %s133 = smul.addr %s132, 20
          %s134 = scalar_lea.vmem [#allocation2], %s133
          %s135 = smul.addr %s9, 4
          %s136 = scalar_lea.vmem %s0, %s135
          // Predicated region
          $region29: #{cnn2d_cell_forward.1} parent=27 // pred_check
            _
          $region30: #{cnn2d_cell_forward.1} parent=27 // pred_check_branch
            %138 = sbr.rel (0) target = $region32
          $region31: #{cnn2d_cell_forward.1} parent=27 // pred_region
            // Predicated region
            $region33: #{cnn2d_cell_forward.1} parent=31 // pred_check
              _
            $region34: #{cnn2d_cell_forward.1} parent=31 // pred_check_branch
              %140 = sbr.rel target = $region36
            $region35: #{cnn2d_cell_forward.1} parent=31 // pred_region
              // Predicated region
              $region48: #{cnn2d_cell_forward.1} parent=35 // pred_check
                _
              $region49: #{cnn2d_cell_forward.1} parent=35 // pred_check_branch
                %164 = sbr.rel (0) target = $region51
              $region50: #{cnn2d_cell_forward.1} parent=35 // pred_region
                loop: start=0, step=1, limit=1
                $region52: #{cnn2d_cell_forward.1} parent=50 // loop_pre_header
                  _
                $region53: #{cnn2d_cell_forward.1} parent=50 // loop_header
                  %s166 = sphi 0, %s170
                  %p167 = scmp.ge.s32.totalorder %s166, 1
                  %s171 = sphi %s136, %s136
                  %s172 = sphi %s134, %s134
                $region54: #{cnn2d_cell_forward.1} parent=50 // loop_header_branch
                  %169 = sbr.rel (%p167) target = $region58
                $region55: #{cnn2d_cell_forward.1} parent=50 // loop_body
                  _
                $region56: #{cnn2d_cell_forward.1} parent=50 // loop_footer
                  %s170 = sadd.s32 1, %s166
                $region57: #{cnn2d_cell_forward.1} parent=50 // loop_footer_branch
                  %165 = sbr.rel target = $region53
                $region58: #{cnn2d_cell_forward.1} parent=50 // loop_exit
                  _
                %s174 = ssub.s32 16, 1
                loop: start=0, step=1, limit=1
                $region59: #{cnn2d_cell_forward.1} parent=50 // loop_pre_header
                  _
                $region60: #{cnn2d_cell_forward.1} parent=50 // loop_header
                  %s176 = sphi 0, %s180
                  %p177 = scmp.ge.s32.totalorder %s176, 1
                  %s181 = sphi %s136, %s136
                  %s182 = sphi %s134, %s134
                $region61: #{cnn2d_cell_forward.1} parent=50 // loop_header_branch
                  %179 = sbr.rel (%p177) target = $region65
                $region62: #{cnn2d_cell_forward.1} parent=50 // loop_body
                  %v183 = vld [vmem:[%s181] sm:%s174]
                  %184 = vst [vmem:[%s182] sm:%s174] %v183
                  %v185 = vld [vmem:[%s181 + $0x10] sm:%s174]
                  %186 = vst [vmem:[%s182 + $0x4] sm:%s174] %v185
                  %v187 = vld [vmem:[%s181 + $0x20] sm:%s174]
                  %188 = vst [vmem:[%s182 + $0x8] sm:%s174] %v187
                  %v189 = vld [vmem:[%s181 + $0x30] sm:%s174]
                  %190 = vst [vmem:[%s182 + $0xc] sm:%s174] %v189
                  %v191 = vld [vmem:[%s181 + $0x40] sm:%s174]
                  %192 = vst [vmem:[%s182 + $0x10] sm:%s174] %v191
                $region63: #{cnn2d_cell_forward.1} parent=50 // loop_footer
                  %s180 = sadd.s32 1, %s176
                $region64: #{cnn2d_cell_forward.1} parent=50 // loop_footer_branch
                  %175 = sbr.rel target = $region60
                $region65: #{cnn2d_cell_forward.1} parent=50 // loop_exit
                  _
              $region51: #{cnn2d_cell_forward.1} parent=35 // pred_fallthru
                _
            $region36: #{cnn2d_cell_forward.1} parent=31 // pred_fallthru
              _
            // Predicated region
            $region37: #{cnn2d_cell_forward.1} parent=31 // pred_check
              _
            $region38: #{cnn2d_cell_forward.1} parent=31 // pred_check_branch
              %142 = sbr.rel (0) target = $region40
            $region39: #{cnn2d_cell_forward.1} parent=31 // pred_region
              %s144 = ssub.s32 16, 1
              loop: start=0, step=1, limit=1
              $region41: #{cnn2d_cell_forward.1} parent=39 // loop_pre_header
                _
              $region42: #{cnn2d_cell_forward.1} parent=39 // loop_header
                %s146 = sphi 0, %s150
                %p147 = scmp.ge.s32.totalorder %s146, 1
                %s151 = sphi %s136, %s136
                %s152 = sphi %s134, %s134
              $region43: #{cnn2d_cell_forward.1} parent=39 // loop_header_branch
                %149 = sbr.rel (%p147) target = $region47
              $region44: #{cnn2d_cell_forward.1} parent=39 // loop_body
                %v153 = vld [vmem:[%s151] sm:%s144]
                %154 = vst [vmem:[%s152] sm:%s144] %v153
                %v155 = vld [vmem:[%s151 + $0x10] sm:%s144]
                %156 = vst [vmem:[%s152 + $0x4] sm:%s144] %v155
                %v157 = vld [vmem:[%s151 + $0x20] sm:%s144]
                %158 = vst [vmem:[%s152 + $0x8] sm:%s144] %v157
                %v159 = vld [vmem:[%s151 + $0x30] sm:%s144]
                %160 = vst [vmem:[%s152 + $0xc] sm:%s144] %v159
                %v161 = vld [vmem:[%s151 + $0x40] sm:%s144]
                %162 = vst [vmem:[%s152 + $0x10] sm:%s144] %v161
              $region45: #{cnn2d_cell_forward.1} parent=39 // loop_footer
                %s150 = sadd.s32 1, %s146
              $region46: #{cnn2d_cell_forward.1} parent=39 // loop_footer_branch
                %145 = sbr.rel target = $region42
              $region47: #{cnn2d_cell_forward.1} parent=39 // loop_exit
                _
            $region40: #{cnn2d_cell_forward.1} parent=31 // pred_fallthru
              _
          $region32: #{cnn2d_cell_forward.1} parent=27 // pred_fallthru
            _
          %193 = vnop
        $region28: #{cnn2d_cell_forward.1} parent=23 // pred_fallthru
          _
      $region24: #{cnn2d_cell_forward.1} parent=5 // pred_fallthru
        _
      %p194 = scmp.le.s32.totalorder 1, %s9
      %p195 = scmp.lt.s32.totalorder %s9, 5
      %p196 = pnand %p194, %p195
      %p197 = pneg %p196
      // Predicated region
      $region66: #{cnn2d_cell_forward.1} parent=5 // pred_check
        _
      $region67: #{cnn2d_cell_forward.1} parent=5 // pred_check_branch
        %199 = sbr.rel (%p196) target = $region69
      $region68: #{cnn2d_cell_forward.1} parent=5 // pred_region
        %s200 = ssub.s32 %s9, 1
        %s201 = sand.u32 %s22, 1
        %s202 = sand.u32 %s22, 1
        %s203 = smul.addr %s202, 20
        %s204 = scalar_lea.vmem [#allocation2], %s203
        // Predicated region
        $region70: #{cnn2d_cell_forward.1} parent=68 // pred_check
          %p205 = pneg %p35
        $region71: #{cnn2d_cell_forward.1} parent=68 // pred_check_branch
          %207 = sbr.rel (%p205) target = $region73
        $region72: #{cnn2d_cell_forward.1} parent=68 // pred_region
          _
        $region73: #{cnn2d_cell_forward.1} parent=68 // pred_fallthru
          _
        %s208 = sand.u32 %s22, 1
        %s209 = sand.u32 %s22, 1
        %s210 = smul.addr %s209, 20
        %s211 = scalar_lea.vmem [#allocation2], %s210
        %p212 = pneg %p35
        %p213 = pneg %p32
        %p214 = pneg %p56
        %p215 = pneg %p53
        %p216 = pneg %p77
        %p217 = pneg %p74
        %p218 = pneg %p103
        %p219 = pneg %p100
        %s220 = sand.u32 %s90, 1
        %s221 = sand.u32 %s90, 1
        %s222 = smul.addr %s221, 16
        %s223 = scalar_lea.vmem [#allocation3], %s222
        %v225 = vld [vmem:[%s1] sm:$0xf]
        %v226 = vld [vmem:[%s1 + $0x4] sm:$0xf]
        %v227 = vld [vmem:[%s1 + $0x8] sm:$0xf]
        %v228 = vld [vmem:[%s1 + $0xc] sm:$0xf]
        %v229 = vld [vmem:[%s204] sm:$0xf]
        %v230 = vld [vmem:[%s204 + $0x4] sm:$0xf]
        %v231 = vld [vmem:[%s204 + $0x8] sm:$0xf]
        %v232 = vld [vmem:[%s204 + $0xc] sm:$0xf]
        %v233 = vld [vmem:[%s204 + $0x10] sm:$0x3]
        %v234 = vld [vmem:[%s2] sm:$0xff]
        %v235 = vld [vmem:[%s2 + $0x8] sm:$0xff]
        %v236 = vld [vmem:[%s2 + $0x10] sm:$0xff]
        %v237 = vld [vmem:[%s2 + $0x18] sm:$0xff]
        %239 = vset.pattern.permute.xlu0 0
        %240 = vperm.xlu0 %239, %v234
        %v241 = vpop.permute.xlu0 %240
        %244 = vset.pattern.permute.xlu0 0
        %245 = vperm.xlu0 %244, %v235
        %v246 = vpop.permute.xlu0 %245
        %249 = vset.pattern.permute.xlu0 0
        %250 = vperm.xlu0 %249, %v236
        %v251 = vpop.permute.xlu0 %250
        %254 = vset.pattern.permute.xlu0 0
        %255 = vperm.xlu0 %254, %v237
        %v256 = vpop.permute.xlu0 %255
        %v262 = vunpack.c.l.b16 %v225
        %v263 = vunpack.c.l.b16 %v226
        %v264 = vunpack.c.l.b16 %v227
        %v265 = vunpack.c.l.b16 %v228
        %v266 = vpack.c.b16 %v263, %v262
        %v267 = vpack.c.b16 %v265, %v264
        %v273 = vunpack.c.l.b16 %v229
        %v274 = vunpack.c.l.b16 %v230
        %v275 = vunpack.c.l.b16 %v231
        %v276 = vunpack.c.l.b16 %v232
        %v277 = vunpack.c.l.b16 %v233
        %v278 = vpack.c.b16 %v274, %v273
        %v279 = vpack.c.b16 %v276, %v275
        %v280 = vpack.c.b16 %v277, %v277
        %vm283 = vcmask 293888
        %v285 = vsel %vm283, %v266, 0
        %v288 = vsel %vm283, %v267, 0
        %vm290 = vcmask 1041408
        %v292 = vsel %vm290, %v280, 0
        %294 = vmatprep.subr.bf16.mxu0 0
        %295 = vmatpush1.bf16.msra.mxu0 0
        %296 = vmatprep.subr.bf16.mxu0 0
        %297 = vmatpush1.bf16.msra.mxu0 0
        %298 = vmatprep.subr.bf16.mxu0 0
        %299 = vmatpush1.bf16.msra.mxu0 0
        %300 = vmatprep.subr.bf16.mxu0 0
        %301 = vmatpush1.bf16.msra.mxu0 0
        %302 = vmatprep.subr.bf16.mxu0 0
        %303 = vmatpush1.bf16.msra.mxu0 0
        %304 = vmatprep.subr.bf16.mxu0 0
        %305 = vmatpush1.bf16.msra.mxu0 %v292
        %306 = vmatprep.subr.bf16.mxu0 0
        %307 = vmatpush1.bf16.msra.mxu0 %v279
        %308 = vmatprep.subr.bf16.mxu0 0
        %309 = vmatpush1.bf16.msra.mxu0 %v278
        %310 = vmatprep.subr.bf16.mxu0 0
        %311 = vmatpush2.bf16.msra.mxu0 0
        %312 = vmatprep.subr.bf16.mxu0 0
        %313 = vmatpush2.bf16.msra.mxu0 0
        %314 = vmatprep.subr.bf16.mxu0 0
        %315 = vmatpush2.bf16.msra.mxu0 0
        %316 = vmatprep.subr.bf16.mxu0 0
        %317 = vmatpush2.bf16.msra.mxu0 0
        %318 = vmatprep.subr.bf16.mxu0 0
        %319 = vmatpush2.bf16.msra.mxu0 0
        %320 = vmatprep.subr.bf16.mxu0 0
        %321 = vmatpush2.bf16.msra.mxu0 0
        %322 = vmatprep.subr.bf16.mxu0 0
        %323 = vmatpush2.bf16.msra.mxu0 0
        %324 = vmatprep.subr.bf16.mxu0 0
        %325 = vmatpush2.bf16.msra.mxu0 0
        %326 = vmatprep.mubr.bf16.mxu0 0
        %327 = vmatmul.mubr.bf16.gmra.mxu0 %v285
        %v328 = vpop.f32.mrf.mxu0
        %v329 = vadd.f32 %v241, %v328
        %v330 = vpop.f32.mrf.mxu0
        %v331 = vpop.f32.mrf.mxu0
        %v332 = vadd.f32 %v246, %v331
        %v333 = vpop.f32.mrf.mxu0
        %334 = vmatprep.mubr.bf16.mxu0 0
        %335 = vmatmul.mubr.bf16.gmra.mxu0 %v288
        %v336 = vpop.f32.mrf.mxu0
        %v337 = vadd.f32 %v251, %v336
        %v338 = vpop.f32.mrf.mxu0
        %v339 = vpop.f32.mrf.mxu0
        %v340 = vadd.f32 %v256, %v339
        %v341 = vpop.f32.mrf.mxu0
        %342 = vdwg.mxu0
        %v343 = vmax.f32 %v329, 0.0
        %v344 = vmax.f32 %v332, 0.0
        %v345 = vmax.f32 %v337, 0.0
        %v346 = vmax.f32 %v340, 0.0
        %v347 = vpack.c.bf16 %v344, %v343
        %v348 = vpack.c.bf16 %v346, %v345
        %v351 = vunpack.c.l.b16 %v347
        %v352 = vunpack.c.h.b16 %v347
        %v353 = vunpack.c.l.b16 %v348
        %v354 = vunpack.c.h.b16 %v348
        %v355 = vpack.c.b16 %v351, %v351
        %v356 = vpack.c.b16 %v352, %v352
        %v357 = vpack.c.b16 %v353, %v353
        %v358 = vpack.c.b16 %v354, %v354
        %363 = vst [vmem:[%s223] sm:$0xf] %v355
        %364 = vst [vmem:[%s223 + $0x4] sm:$0xf] %v356
        %365 = vst [vmem:[%s223 + $0x8] sm:$0xf] %v357
        %366 = vst [vmem:[%s223 + $0xc] sm:$0xf] %v358
        %s367 = sand.u32 %s90, 1
        %s368 = sand.u32 %s90, 1
        %s369 = smul.addr %s368, 16
        %s370 = scalar_lea.vmem [#allocation3], %s369
        // Predicated region
        $region74: #{cnn2d_cell_forward.1} parent=68 // pred_check
          %p371 = pneg %p100
        $region75: #{cnn2d_cell_forward.1} parent=68 // pred_check_branch
          %373 = sbr.rel (%p371) target = $region77
        $region76: #{cnn2d_cell_forward.1} parent=68 // pred_region
          %s374 = smul.addr %s14, 4
          %s375 = scalar_lea.vmem %s3, %s374
          // Predicated region
          $region78: #{cnn2d_cell_forward.1} parent=76 // pred_check
            _
          $region79: #{cnn2d_cell_forward.1} parent=76 // pred_check_branch
            %377 = sbr.rel (0) target = $region81
          $region80: #{cnn2d_cell_forward.1} parent=76 // pred_region
            // Predicated region
            $region82: #{cnn2d_cell_forward.1} parent=80 // pred_check
              _
            $region83: #{cnn2d_cell_forward.1} parent=80 // pred_check_branch
              %379 = sbr.rel target = $region85
            $region84: #{cnn2d_cell_forward.1} parent=80 // pred_region
              // Predicated region
              $region97: #{cnn2d_cell_forward.1} parent=84 // pred_check
                _
              $region98: #{cnn2d_cell_forward.1} parent=84 // pred_check_branch
                %401 = sbr.rel (0) target = $region100
              $region99: #{cnn2d_cell_forward.1} parent=84 // pred_region
                loop: start=0, step=1, limit=1
                $region101: #{cnn2d_cell_forward.1} parent=99 // loop_pre_header
                  _
                $region102: #{cnn2d_cell_forward.1} parent=99 // loop_header
                  %s403 = sphi 0, %s407
                  %p404 = scmp.ge.s32.totalorder %s403, 1
                  %s408 = sphi %s370, %s370
                  %s409 = sphi %s375, %s375
                $region103: #{cnn2d_cell_forward.1} parent=99 // loop_header_branch
                  %406 = sbr.rel (%p404) target = $region107
                $region104: #{cnn2d_cell_forward.1} parent=99 // loop_body
                  _
                $region105: #{cnn2d_cell_forward.1} parent=99 // loop_footer
                  %s407 = sadd.s32 1, %s403
                $region106: #{cnn2d_cell_forward.1} parent=99 // loop_footer_branch
                  %402 = sbr.rel target = $region102
                $region107: #{cnn2d_cell_forward.1} parent=99 // loop_exit
                  _
                %s411 = ssub.s32 16, 1
                loop: start=0, step=1, limit=1
                $region108: #{cnn2d_cell_forward.1} parent=99 // loop_pre_header
                  _
                $region109: #{cnn2d_cell_forward.1} parent=99 // loop_header
                  %s413 = sphi 0, %s417
                  %p414 = scmp.ge.s32.totalorder %s413, 1
                  %s418 = sphi %s370, %s370
                  %s419 = sphi %s375, %s375
                $region110: #{cnn2d_cell_forward.1} parent=99 // loop_header_branch
                  %416 = sbr.rel (%p414) target = $region114
                $region111: #{cnn2d_cell_forward.1} parent=99 // loop_body
                  %v420 = vld [vmem:[%s418] sm:%s411]
                  %421 = vst [vmem:[%s419] sm:%s411] %v420
                  %v422 = vld [vmem:[%s418 + $0x4] sm:%s411]
                  %423 = vst [vmem:[%s419 + $0x10] sm:%s411] %v422
                  %v424 = vld [vmem:[%s418 + $0x8] sm:%s411]
                  %425 = vst [vmem:[%s419 + $0x20] sm:%s411] %v424
                  %v426 = vld [vmem:[%s418 + $0xc] sm:%s411]
                  %427 = vst [vmem:[%s419 + $0x30] sm:%s411] %v426
                $region112: #{cnn2d_cell_forward.1} parent=99 // loop_footer
                  %s417 = sadd.s32 1, %s413
                $region113: #{cnn2d_cell_forward.1} parent=99 // loop_footer_branch
                  %412 = sbr.rel target = $region109
                $region114: #{cnn2d_cell_forward.1} parent=99 // loop_exit
                  _
              $region100: #{cnn2d_cell_forward.1} parent=84 // pred_fallthru
                _
            $region85: #{cnn2d_cell_forward.1} parent=80 // pred_fallthru
              _
            // Predicated region
            $region86: #{cnn2d_cell_forward.1} parent=80 // pred_check
              _
            $region87: #{cnn2d_cell_forward.1} parent=80 // pred_check_branch
              %381 = sbr.rel (0) target = $region89
            $region88: #{cnn2d_cell_forward.1} parent=80 // pred_region
              %s383 = ssub.s32 16, 1
              loop: start=0, step=1, limit=1
              $region90: #{cnn2d_cell_forward.1} parent=88 // loop_pre_header
                _
              $region91: #{cnn2d_cell_forward.1} parent=88 // loop_header
                %s385 = sphi 0, %s389
                %p386 = scmp.ge.s32.totalorder %s385, 1
                %s390 = sphi %s370, %s370
                %s391 = sphi %s375, %s375
              $region92: #{cnn2d_cell_forward.1} parent=88 // loop_header_branch
                %388 = sbr.rel (%p386) target = $region96
              $region93: #{cnn2d_cell_forward.1} parent=88 // loop_body
                %v392 = vld [vmem:[%s390] sm:%s383]
                %393 = vst [vmem:[%s391] sm:%s383] %v392
                %v394 = vld [vmem:[%s390 + $0x4] sm:%s383]
                %395 = vst [vmem:[%s391 + $0x10] sm:%s383] %v394
                %v396 = vld [vmem:[%s390 + $0x8] sm:%s383]
                %397 = vst [vmem:[%s391 + $0x20] sm:%s383] %v396
                %v398 = vld [vmem:[%s390 + $0xc] sm:%s383]
                %399 = vst [vmem:[%s391 + $0x30] sm:%s383] %v398
              $region94: #{cnn2d_cell_forward.1} parent=88 // loop_footer
                %s389 = sadd.s32 1, %s385
              $region95: #{cnn2d_cell_forward.1} parent=88 // loop_footer_branch
                %384 = sbr.rel target = $region91
              $region96: #{cnn2d_cell_forward.1} parent=88 // loop_exit
                _
            $region89: #{cnn2d_cell_forward.1} parent=80 // pred_fallthru
              _
          $region81: #{cnn2d_cell_forward.1} parent=76 // pred_fallthru
            _
          %428 = vnop
        $region77: #{cnn2d_cell_forward.1} parent=68 // pred_fallthru
          _
      $region69: #{cnn2d_cell_forward.1} parent=5 // pred_fallthru
        _
      %p429 = scmp.le.s32.totalorder 2, %s9
      // Predicated region
      $region115: #{cnn2d_cell_forward.1} parent=5 // pred_check
        %p430 = pneg %p429
      $region116: #{cnn2d_cell_forward.1} parent=5 // pred_check_branch
        %432 = sbr.rel (%p430) target = $region118
      $region117: #{cnn2d_cell_forward.1} parent=5 // pred_region
        %s433 = ssub.s32 %s9, 2
        // Predicated region
        $region119: #{cnn2d_cell_forward.1} parent=117 // pred_check
          %p434 = pneg %p106
        $region120: #{cnn2d_cell_forward.1} parent=117 // pred_check_branch
          %436 = sbr.rel (%p434) target = $region122
        $region121: #{cnn2d_cell_forward.1} parent=117 // pred_region
          %s437 = sand.u32 %s91, 1
          %s438 = sand.u32 %s91, 1
          %s439 = smul.addr %s438, 16
          %s440 = scalar_lea.vmem [#allocation3], %s439
        $region122: #{cnn2d_cell_forward.1} parent=117 // pred_fallthru
          _
      $region118: #{cnn2d_cell_forward.1} parent=5 // pred_fallthru
        _
    $region6: #{cnn2d_cell_forward.1} parent=1 // loop_footer
      %s13 = sadd.s32 1, %s9
    $region7: #{cnn2d_cell_forward.1} parent=1 // loop_footer_branch
      %8 = sbr.rel target = $region3
    $region8: #{cnn2d_cell_forward.1} parent=1 // loop_exit
      _

</llo_original>
